<compile_context>
chip_gen: v7x
topology: tpu7x:2x2x1
jax: 0.10.0
libtpu: 0.0.40
codegen_flags: <defaults>
</compile_context>

<pallas_src>
import jax
import jax.numpy as jnp
from jax import lax
from jax.experimental import pallas as pl
from jax.experimental.pallas import tpu as pltpu

C1 = 0.01 ** 2
C2 = 0.03 ** 2
# 1/9 pool normalization folded into the constants (we work with raw 3x3 sums).
_C1_81 = 81.0 * C1
_C2_81 = 81.0 * C2


# ----------------------------------------------------------------------------
# Kernel body: reflection-padded 3x3 average pooling via aligned rotations,
# then the SSIM loss formula.
# ----------------------------------------------------------------------------
def _ssim_kernel(x_ref, y_ref, o_ref):
    x = x_ref[...].astype(jnp.float32)
    y = y_ref[...].astype(jnp.float32)
    B, H, W = x.shape

    col = lax.broadcasted_iota(jnp.int32, (B, H, W), 2)
    row = lax.broadcasted_iota(jnp.int32, (B, H, W), 1)
    col_first = col == 0
    col_last = col == (W - 1)
    row_first = row == 0
    row_last = row == (H - 1)

    def neighbors_lane(a):
        # Left / right neighbors along the lane (W) axis with reflection at the
        # borders (ReflectionPad2d(1)): two aligned XLU rotations + VALU selects.
        rp = pltpu.roll(a, shift=1, axis=2)       # rp[j] = a[j-1]   (wraps at 0)
        rm = pltpu.roll(a, shift=W - 1, axis=2)   # rm[j] = a[j+1]   (wraps at W-1)
        left = jnp.where(col_first, rm, rp)       # reflected: a[1]   at j == 0
        right = jnp.where(col_last, rp, rm)       # reflected: a[W-2] at j == W-1
        return left, right

    def vsum3(a):
        # 3-tap vertical (sublane) sum with reflected borders.
        rp = pltpu.roll(a, shift=1, axis=1)       # rp[i] = a[i-1]
        rm = pltpu.roll(a, shift=H - 1, axis=1)   # rm[i] = a[i+1]
        up = jnp.where(row_first, rm, rp)         # reflected: a[1]   at i == 0
        down = jnp.where(row_last, rp, rm)        # reflected: a[H-2] at i == H-1
        return up + a + down

    # Stage 1: horizontal 3-tap sums.  Shifted x/y planes are computed once
    # (4 rotations total) and reused for the product sums.
    xl, xr = neighbors_lane(x)
    yl, yr = neighbors_lane(y)
    hx = xl + x + xr
    hy = yl + y + yr
    hxx = xl * xl + x * x + xr * xr
    hyy = yl * yl + y * y + yr * yr
    hxy = xl * yl + x * y + xr * yr

    # Stage 2: vertical 3-tap sums -> raw 3x3 sums (no per-pixel *1/9: the
    # normalization is folded into the constants below).
    sx = vsum3(hx)
    sy = vsum3(hy)
    sxx = vsum3(hxx)
    syy = vsum3(hyy)
    sxy = vsum3(hxy)

    sxsy = sx * sy
    sx2 = sx * sx
    sy2 = sy * sy
    ssim_n = (2.0 * sxsy + _C1_81) * (18.0 * sxy - 2.0 * sxsy + _C2_81)
    ssim_d = (sx2 + sy2 + _C1_81) * (9.0 * (sxx + syy) - sx2 - sy2 + _C2_81)

    # EUP approximate reciprocal + one Newton refinement (~f32 accuracy) keeps
    # the divide off the saturated VALU slot.  ssim_d >= 81^2 * C1*C2 > 0.
    r = pl.reciprocal(ssim_d, approx=True)
    r = r * (2.0 - ssim_d * r)

    out = (1.0 - ssim_n * r) * 0.5
    o_ref[...] = jnp.clip(out, 0.0, 1.0).astype(o_ref.dtype)


# ----------------------------------------------------------------------------
# Generation-aware block sizing.
# ----------------------------------------------------------------------------
def _vmem_capacity_bytes():
    try:
        info = pltpu.get_tpu_info()
        cap = getattr(info, "vmem_capacity_bytes", None)
        if cap:
            return int(cap)
    except Exception:
        pass
    return 64 << 20  # conservative default (v7x per-TC capacity)


def _pick_planes_per_block(num_planes, H, W, in_itemsize, budget_bytes):
    # Per-plane VMEM bytes: two double-buffered inputs (native dtype), a
    # double-buffered f32 output, and ~14 live full-plane f32 temporaries in
    # the roll-based body (x, y, xl/xr/yl/yr, h*, s*, iota masks).
    per_plane = H * W * (2 * 2 * in_itemsize + 2 * 4 + 14 * 4)
    cap = max(1, budget_bytes // per_plane)
    divisors = [d for d in range(1, num_planes + 1) if num_planes % d == 0]
    fits = [d for d in divisors if d <= cap] or [1]
    # Prefer >= 2 grid steps: keeps the DMA/compute pipeline alive and gives
    # both v7x TensorCores work; otherwise take the biggest fitting block.
    two_step = [d for d in fits if num_planes // d >= 2]
    return max(two_step) if two_step else max(fits)


# ----------------------------------------------------------------------------
# Wrapper.
# ----------------------------------------------------------------------------
def ssim(x, y):
    """SSIM loss map matching the PyTorch SSIM module.  x, y: (N, C, H, W)."""
    assert x.shape == y.shape
    N, C, H, W = x.shape
    assert H >= 2 and W >= 2  # ReflectionPad2d(1) requirement

    # TODO(synk): for very large planes (per-plane temporaries exceeding the
    # per-step VMEM budget) add an H-strip grid axis with a 1-row halo.

    NC = N * C
    xf = x.reshape(NC, H, W)  # native dtype; f32 cast happens in-kernel
    yf = y.reshape(NC, H, W)

    cap = _vmem_capacity_bytes()
    vmem_limit = min(int(cap * 0.75), 96 << 20)
    budget = int(vmem_limit * 0.6)
    itemsize = jnp.dtype(x.dtype).itemsize
    B = _pick_planes_per_block(NC, H, W, itemsize, budget)

    spec = pl.BlockSpec((B, H, W), lambda i: (i, 0, 0))
    out = pl.pallas_call(
        _ssim_kernel,
        out_shape=jax.ShapeDtypeStruct((NC, H, W), jnp.float32),
        grid=(NC // B,),
        in_specs=[spec, spec],
        out_specs=pl.BlockSpec((B, H, W), lambda i: (i, 0, 0)),
        compiler_params=pltpu.CompilerParams(
            dimension_semantics=("parallel",),
            vmem_limit_bytes=vmem_limit),
    )(xf, yf)
    return out.reshape(N, C, H, W)


# ----------------------------------------------------------------------------
# Pure-JAX reference mirroring the PyTorch module.
# ----------------------------------------------------------------------------
def _ssim_ref(x, y):
    pad = ((0, 0), (0, 0), (1, 1), (1, 1))
    xp = jnp.pad(x, pad, mode="reflect")
    yp = jnp.pad(y, pad, mode="reflect")

    def avgpool3(a):
        N, C, Hp, Wp = a.shape
        H, W = Hp - 2, Wp - 2
        s = jnp.zeros((N, C, H, W), jnp.float32)
        for di in range(3):
            for dj in range(3):
                s = s + a[:, :, di:di + H, dj:dj + W]
        return s / 9.0

    mu_x = avgpool3(xp)
    mu_y = avgpool3(yp)
    sigma_x = avgpool3(xp * xp) - mu_x ** 2
    sigma_y = avgpool3(yp * yp) - mu_y ** 2
    sigma_xy = avgpool3(xp * yp) - mu_x * mu_y
    n = (2 * mu_x * mu_y + C1) * (2 * sigma_xy + C2)
    d = (mu_x ** 2 + mu_y ** 2 + C1) * (sigma_x + sigma_y + C2)
    return jnp.clip((1 - n / d) / 2, 0.0, 1.0)


if __name__ == "__main__":
    key = jax.random.PRNGKey(0)
    kx, ky = jax.random.split(key)
    N, C, H, W = 2, 4, 16, 16
    x = jax.random.uniform(kx, (N, C, H, W), dtype=jnp.float32)
    y = jax.random.uniform(ky, (N, C, H, W), dtype=jnp.float32)

    out = jax.block_until_ready(ssim(x, y))
    ref = _ssim_ref(x, y)

    assert out.shape == (N, C, H, W)
    # 1e-4 tolerance: folded constants + approx-reciprocal-with-Newton path is
    # ~1e-6 relative, well inside this bound for a [0, 1] loss map.
    assert jnp.allclose(out, ref, atol=1e-4, rtol=1e-4), float(
        jnp.max(jnp.abs(out - ref)))

    print("KERNEL_OK")
</pallas_src>

<mosaic_0001>
module attributes {stable_mosaic.version = 11 : i64} {
  func.func @_ssim_kernel(%arg0: i32, %arg1: memref<4x16x16xf32, #tpu.memory_space<vmem>>, %arg2: memref<4x16x16xf32, #tpu.memory_space<vmem>>, %arg3: memref<4x16x16xf32, #tpu.memory_space<vmem>>) attributes {dimension_semantics = [#tpu.dimension_semantics<parallel>], iteration_bounds = array<i64: 2>, scalar_prefetch = 0 : i64, scratch_operands = 0 : i64, tpu.core_type = #tpu.core_type<tc>, window_params = [{transform_indices = @transform_0, window_bounds = array<i64: 4, 16, 16>}, {transform_indices = @transform_1, window_bounds = array<i64: 4, 16, 16>}, {transform_indices = @transform_2, window_bounds = array<i64: 4, 16, 16>}]} {
    %c0 = arith.constant 0 : index
    %c0_0 = arith.constant 0 : index
    %c0_1 = arith.constant 0 : index
    %0 = vector.load %arg1[%c0, %c0_0, %c0_1] : memref<4x16x16xf32, #tpu.memory_space<vmem>>, vector<4x16x16xf32>
    %c0_2 = arith.constant 0 : index
    %c0_3 = arith.constant 0 : index
    %c0_4 = arith.constant 0 : index
    %1 = vector.load %arg2[%c0_2, %c0_3, %c0_4] : memref<4x16x16xf32, #tpu.memory_space<vmem>>, vector<4x16x16xf32>
    %2 = tpu.iota {dimensions = array<i32: 2>} : vector<4x16x16xi32>
    %3 = tpu.iota {dimensions = array<i32: 1>} : vector<4x16x16xi32>
    %c0_i32 = arith.constant 0 : i32
    %4 = vector.broadcast %c0_i32 : i32 to vector<4x16x16xi32>
    %5 = arith.cmpi eq, %2, %4 : vector<4x16x16xi32>
    %c15_i32 = arith.constant 15 : i32
    %6 = vector.broadcast %c15_i32 : i32 to vector<4x16x16xi32>
    %7 = arith.cmpi eq, %2, %6 : vector<4x16x16xi32>
    %c0_i32_5 = arith.constant 0 : i32
    %8 = vector.broadcast %c0_i32_5 : i32 to vector<4x16x16xi32>
    %9 = arith.cmpi eq, %3, %8 : vector<4x16x16xi32>
    %c15_i32_6 = arith.constant 15 : i32
    %10 = vector.broadcast %c15_i32_6 : i32 to vector<4x16x16xi32>
    %11 = arith.cmpi eq, %3, %10 : vector<4x16x16xi32>
    %c1_i32 = arith.constant 1 : i32
    %12 = tpu.dynamic_rotate %0 by %c1_i32 dim 2 : vector<4x16x16xf32>, i32 -> vector<4x16x16xf32>
    %c15_i32_7 = arith.constant 15 : i32
    %13 = tpu.dynamic_rotate %0 by %c15_i32_7 dim 2 : vector<4x16x16xf32>, i32 -> vector<4x16x16xf32>
    %14 = arith.select %5, %13, %12 : vector<4x16x16xi1>, vector<4x16x16xf32>
    %15 = arith.select %7, %12, %13 : vector<4x16x16xi1>, vector<4x16x16xf32>
    %c1_i32_8 = arith.constant 1 : i32
    %16 = tpu.dynamic_rotate %1 by %c1_i32_8 dim 2 : vector<4x16x16xf32>, i32 -> vector<4x16x16xf32>
    %c15_i32_9 = arith.constant 15 : i32
    %17 = tpu.dynamic_rotate %1 by %c15_i32_9 dim 2 : vector<4x16x16xf32>, i32 -> vector<4x16x16xf32>
    %18 = arith.select %5, %17, %16 : vector<4x16x16xi1>, vector<4x16x16xf32>
    %19 = arith.select %7, %16, %17 : vector<4x16x16xi1>, vector<4x16x16xf32>
    %20 = arith.addf %14, %0 : vector<4x16x16xf32>
    %21 = arith.addf %20, %15 : vector<4x16x16xf32>
    %22 = arith.addf %18, %1 : vector<4x16x16xf32>
    %23 = arith.addf %22, %19 : vector<4x16x16xf32>
    %24 = arith.mulf %14, %14 : vector<4x16x16xf32>
    %25 = arith.mulf %0, %0 : vector<4x16x16xf32>
    %26 = arith.addf %24, %25 : vector<4x16x16xf32>
    %27 = arith.mulf %15, %15 : vector<4x16x16xf32>
    %28 = arith.addf %26, %27 : vector<4x16x16xf32>
    %29 = arith.mulf %18, %18 : vector<4x16x16xf32>
    %30 = arith.mulf %1, %1 : vector<4x16x16xf32>
    %31 = arith.addf %29, %30 : vector<4x16x16xf32>
    %32 = arith.mulf %19, %19 : vector<4x16x16xf32>
    %33 = arith.addf %31, %32 : vector<4x16x16xf32>
    %34 = arith.mulf %14, %18 : vector<4x16x16xf32>
    %35 = arith.mulf %0, %1 : vector<4x16x16xf32>
    %36 = arith.addf %34, %35 : vector<4x16x16xf32>
    %37 = arith.mulf %15, %19 : vector<4x16x16xf32>
    %38 = arith.addf %36, %37 : vector<4x16x16xf32>
    %c1_i32_10 = arith.constant 1 : i32
    %39 = tpu.dynamic_rotate %21 by %c1_i32_10 dim 1 : vector<4x16x16xf32>, i32 -> vector<4x16x16xf32>
    %c15_i32_11 = arith.constant 15 : i32
    %40 = tpu.dynamic_rotate %21 by %c15_i32_11 dim 1 : vector<4x16x16xf32>, i32 -> vector<4x16x16xf32>
    %41 = arith.select %9, %40, %39 : vector<4x16x16xi1>, vector<4x16x16xf32>
    %42 = arith.select %11, %39, %40 : vector<4x16x16xi1>, vector<4x16x16xf32>
    %43 = arith.addf %41, %21 : vector<4x16x16xf32>
    %44 = arith.addf %43, %42 : vector<4x16x16xf32>
    %c1_i32_12 = arith.constant 1 : i32
    %45 = tpu.dynamic_rotate %23 by %c1_i32_12 dim 1 : vector<4x16x16xf32>, i32 -> vector<4x16x16xf32>
    %c15_i32_13 = arith.constant 15 : i32
    %46 = tpu.dynamic_rotate %23 by %c15_i32_13 dim 1 : vector<4x16x16xf32>, i32 -> vector<4x16x16xf32>
    %47 = arith.select %9, %46, %45 : vector<4x16x16xi1>, vector<4x16x16xf32>
    %48 = arith.select %11, %45, %46 : vector<4x16x16xi1>, vector<4x16x16xf32>
    %49 = arith.addf %47, %23 : vector<4x16x16xf32>
    %50 = arith.addf %49, %48 : vector<4x16x16xf32>
    %c1_i32_14 = arith.constant 1 : i32
    %51 = tpu.dynamic_rotate %28 by %c1_i32_14 dim 1 : vector<4x16x16xf32>, i32 -> vector<4x16x16xf32>
    %c15_i32_15 = arith.constant 15 : i32
    %52 = tpu.dynamic_rotate %28 by %c15_i32_15 dim 1 : vector<4x16x16xf32>, i32 -> vector<4x16x16xf32>
    %53 = arith.select %9, %52, %51 : vector<4x16x16xi1>, vector<4x16x16xf32>
    %54 = arith.select %11, %51, %52 : vector<4x16x16xi1>, vector<4x16x16xf32>
    %55 = arith.addf %53, %28 : vector<4x16x16xf32>
    %56 = arith.addf %55, %54 : vector<4x16x16xf32>
    %c1_i32_16 = arith.constant 1 : i32
    %57 = tpu.dynamic_rotate %33 by %c1_i32_16 dim 1 : vector<4x16x16xf32>, i32 -> vector<4x16x16xf32>
    %c15_i32_17 = arith.constant 15 : i32
    %58 = tpu.dynamic_rotate %33 by %c15_i32_17 dim 1 : vector<4x16x16xf32>, i32 -> vector<4x16x16xf32>
    %59 = arith.select %9, %58, %57 : vector<4x16x16xi1>, vector<4x16x16xf32>
    %60 = arith.select %11, %57, %58 : vector<4x16x16xi1>, vector<4x16x16xf32>
    %61 = arith.addf %59, %33 : vector<4x16x16xf32>
    %62 = arith.addf %61, %60 : vector<4x16x16xf32>
    %c1_i32_18 = arith.constant 1 : i32
    %63 = tpu.dynamic_rotate %38 by %c1_i32_18 dim 1 : vector<4x16x16xf32>, i32 -> vector<4x16x16xf32>
    %c15_i32_19 = arith.constant 15 : i32
    %64 = tpu.dynamic_rotate %38 by %c15_i32_19 dim 1 : vector<4x16x16xf32>, i32 -> vector<4x16x16xf32>
    %65 = arith.select %9, %64, %63 : vector<4x16x16xi1>, vector<4x16x16xf32>
    %66 = arith.select %11, %63, %64 : vector<4x16x16xi1>, vector<4x16x16xf32>
    %67 = arith.addf %65, %38 : vector<4x16x16xf32>
    %68 = arith.addf %67, %66 : vector<4x16x16xf32>
    %69 = arith.mulf %44, %50 : vector<4x16x16xf32>
    %70 = arith.mulf %44, %44 : vector<4x16x16xf32>
    %71 = arith.mulf %50, %50 : vector<4x16x16xf32>
    %cst = arith.constant 2.000000e+00 : f32
    %72 = vector.broadcast %cst : f32 to vector<4x16x16xf32>
    %73 = arith.mulf %72, %69 : vector<4x16x16xf32>
    %cst_20 = arith.constant 8.100000e-03 : f32
    %74 = vector.broadcast %cst_20 : f32 to vector<4x16x16xf32>
    %75 = arith.addf %73, %74 : vector<4x16x16xf32>
    %cst_21 = arith.constant 1.800000e+01 : f32
    %76 = vector.broadcast %cst_21 : f32 to vector<4x16x16xf32>
    %77 = arith.mulf %76, %68 : vector<4x16x16xf32>
    %cst_22 = arith.constant 2.000000e+00 : f32
    %78 = vector.broadcast %cst_22 : f32 to vector<4x16x16xf32>
    %79 = arith.mulf %78, %69 : vector<4x16x16xf32>
    %80 = arith.subf %77, %79 : vector<4x16x16xf32>
    %cst_23 = arith.constant 7.290000e-02 : f32
    %81 = vector.broadcast %cst_23 : f32 to vector<4x16x16xf32>
    %82 = arith.addf %80, %81 : vector<4x16x16xf32>
    %83 = arith.mulf %75, %82 : vector<4x16x16xf32>
    %84 = arith.addf %70, %71 : vector<4x16x16xf32>
    %cst_24 = arith.constant 8.100000e-03 : f32
    %85 = vector.broadcast %cst_24 : f32 to vector<4x16x16xf32>
    %86 = arith.addf %84, %85 : vector<4x16x16xf32>
    %87 = arith.addf %56, %62 : vector<4x16x16xf32>
    %cst_25 = arith.constant 9.000000e+00 : f32
    %88 = vector.broadcast %cst_25 : f32 to vector<4x16x16xf32>
    %89 = arith.mulf %88, %87 : vector<4x16x16xf32>
    %90 = arith.subf %89, %70 : vector<4x16x16xf32>
    %91 = arith.subf %90, %71 : vector<4x16x16xf32>
    %cst_26 = arith.constant 7.290000e-02 : f32
    %92 = vector.broadcast %cst_26 : f32 to vector<4x16x16xf32>
    %93 = arith.addf %91, %92 : vector<4x16x16xf32>
    %94 = arith.mulf %86, %93 : vector<4x16x16xf32>
    %95 = tpu.reciprocal %94 {approx = true} : vector<4x16x16xf32> -> vector<4x16x16xf32>
    %96 = arith.mulf %94, %95 : vector<4x16x16xf32>
    %cst_27 = arith.constant 2.000000e+00 : f32
    %97 = vector.broadcast %cst_27 : f32 to vector<4x16x16xf32>
    %98 = arith.subf %97, %96 : vector<4x16x16xf32>
    %99 = arith.mulf %95, %98 : vector<4x16x16xf32>
    %100 = arith.mulf %83, %99 : vector<4x16x16xf32>
    %cst_28 = arith.constant 1.000000e+00 : f32
    %101 = vector.broadcast %cst_28 : f32 to vector<4x16x16xf32>
    %102 = arith.subf %101, %100 : vector<4x16x16xf32>
    %cst_29 = arith.constant 5.000000e-01 : f32
    %103 = vector.broadcast %cst_29 : f32 to vector<4x16x16xf32>
    %104 = arith.mulf %102, %103 : vector<4x16x16xf32>
    %cst_30 = arith.constant 0.000000e+00 : f32
    %cst_31 = arith.constant 1.000000e+00 : f32
    %105 = vector.broadcast %cst_30 : f32 to vector<4x16x16xf32>
    %106 = arith.maximumf %105, %104 : vector<4x16x16xf32>
    %107 = vector.broadcast %cst_31 : f32 to vector<4x16x16xf32>
    %108 = arith.minimumf %107, %106 : vector<4x16x16xf32>
    %c0_32 = arith.constant 0 : index
    %c0_33 = arith.constant 0 : index
    %c0_34 = arith.constant 0 : index
    %109 = vector.load %arg3[%c0_32, %c0_33, %c0_34] : memref<4x16x16xf32, #tpu.memory_space<vmem>>, vector<4x16x16xf32>
    tpu.vector_store %arg3[%c0_32, %c0_33, %c0_34], %108 {strides = array<i32>} : memref<4x16x16xf32, #tpu.memory_space<vmem>>, vector<4x16x16xf32>,
    return
  }
  func.func @transform_0(%arg0: i32) -> (i32, i32, i32) {
    %c0_i32 = arith.constant 0 : i32
    %c0_i32_0 = arith.constant 0 : i32
    %c0_i32_1 = arith.constant 0 : i32
    return %arg0, %c0_i32, %c0_i32_0 : i32, i32, i32
  }
  func.func @transform_1(%arg0: i32) -> (i32, i32, i32) {
    %c0_i32 = arith.constant 0 : i32
    %c0_i32_0 = arith.constant 0 : i32
    %c0_i32_1 = arith.constant 0 : i32
    return %arg0, %c0_i32, %c0_i32_0 : i32, i32, i32
  }
  func.func @transform_2(%arg0: i32) -> (i32, i32, i32) {
    %c0_i32 = arith.constant 0 : i32
    %c0_i32_0 = arith.constant 0 : i32
    %c0_i32_1 = arith.constant 0 : i32
    return %arg0, %c0_i32, %c0_i32_0 : i32, i32, i32
  }
}

</mosaic_0001>

<llo_original>
// kernel: tpu_custom_call.1
$region0: #{tpu_custom_call.1}
  #allocation0 [shape = 'u32[]', space=smem, size = 0x4, offset = 0x4, fixed_abs, tag = 'smem constant byte address 0x4 - core index']
  #allocation1 [shape = 'u32[144,128]{1,0:T(1,128)}', space=vmem, size = 0x12000, scoped, tag = 'internal scratch']
  %s0 = inlined_call_operand.hbm [shape: f32[8,16,16], index: 0, kind: input, shape index: {}]
  %s1 = inlined_call_operand.hbm [shape: f32[8,16,16], index: 1, kind: input, shape index: {}]
  %s2 = inlined_call_operand.hbm [shape: f32[8,16,16], index: 2, kind: output, shape index: {}]
  %s3 = sld [smem:[#allocation0]]
  $region49: #{tpu_custom_call.1} parent=0
    _
  %s5 = ssub.s32 1, %s3
  %s6 = scalar_select 0, %s5, %s3
  $region1: #{tpu_custom_call.1} parent=0
    #allocation2 [shape = 'u8[65536]{0}', space=vmem, size = 0x10000, scoped, tag = 'input window, operand 0']
    #allocation3 [shape = 's32[2]{0}', space=sflag, size = 0x8, scoped, tag = 'scoped memory for tpu_custom_call.1']
    #allocation4 [shape = 's32[2]{0}', space=sflag, size = 0x8, scoped, tag = 'scoped memory for tpu_custom_call.1']
    #allocation5 [shape = 'u8[65536]{0}', space=vmem, size = 0x10000, scoped, tag = 'input window, operand 1']
    #allocation6 [shape = 's32[2]{0}', space=sflag, size = 0x8, scoped, tag = 'scoped memory for tpu_custom_call.1']
    #allocation7 [shape = 'u8[65536]{0}', space=vmem, size = 0x10000, scoped, tag = 'output window, operand 0']
    %7 = vsyncpa [#allocation3], 0
    %s8 = scalar_lea.sflag [#allocation3], 1
    %9 = vsyncpa %s8, 0
    %10 = vsyncpa [#allocation6], 0
    %s11 = scalar_lea.sflag [#allocation6], 1
    %12 = vsyncpa %s11, 0
    %13 = vsyncpa [#allocation4], 0
    %s14 = scalar_lea.sflag [#allocation4], 1
    %15 = vsyncpa %s14, 0
    loop: start=0, step=1, limit=4
    $region2: #{tpu_custom_call.1} parent=1 // loop_pre_header
      _
    $region3: #{tpu_custom_call.1} parent=1 // loop_header
      %s17 = sphi 0, %s21
      %p18 = scmp.ge.s32.totalorder %s17, 4
      %s27 = sphi 0, %s29
      %s30 = sphi 0, %s27
      %s31 = sphi 0, %s30
      %s47 = sphi 0, %s31
      %s53 = sphi 0, %s55
      %s56 = sphi 0, %s53
      %s57 = sphi 0, %s56
      %s73 = sphi 0, %s57
      %s79 = sphi 0, %s81
      %s82 = sphi 0, %s79
      %s83 = sphi 0, %s82
      %s99 = sphi 0, %s83
    $region4: #{tpu_custom_call.1} parent=1 // loop_header_branch
      %20 = sbr.rel (%p18) target = $region8
    $region5: #{tpu_custom_call.1} parent=1 // loop_body
      %s22 = ssub.s32 %s17, 1
      %s23 = ssub.s32 %s17, 2
      %s24 = sadd.s32 %s17, 1
      %s25 = ssub.s32 %s17, %s24
      %p26 = scmp.eq.s32.totalorder %s25, 0
      %s28 = sadd.s32 %s27, 1
      %s29 = scalar_select %p26, %s27, %s28
      %p32 = pneg %p26
      %p33 = scmp.eq.s32.totalorder %s17, 1
      %p34 = por %p32, %p33
      %p35 = scmp.ne.s32.totalorder %s27, %s30
      %p36 = scmp.eq.s32.totalorder %s17, 0
      %p37 = por %p35, %p36
      %p38 = scmp.ne.s32.totalorder %s27, %s30
      %p39 = scmp.eq.s32.totalorder %s22, 1
      %p40 = por %p38, %p39
      %p41 = scmp.ne.s32.totalorder %s30, %s31
      %p42 = scmp.eq.s32.totalorder %s22, 0
      %p43 = por %p41, %p42
      %p44 = scmp.ne.s32.totalorder %s30, %s31
      %p45 = scmp.eq.s32.totalorder %s23, 1
      %p46 = por %p44, %p45
      %p48 = scmp.ne.s32.totalorder %s31, %s47
      %p49 = scmp.eq.s32.totalorder %s23, 0
      %p50 = por %p48, %p49
      %s51 = ssub.s32 %s17, %s24
      %p52 = scmp.eq.s32.totalorder %s51, 0
      %s54 = sadd.s32 %s53, 1
      %s55 = scalar_select %p52, %s53, %s54
      %p58 = pneg %p52
      %p59 = scmp.eq.s32.totalorder %s17, 1
      %p60 = por %p58, %p59
      %p61 = scmp.ne.s32.totalorder %s53, %s56
      %p62 = scmp.eq.s32.totalorder %s17, 0
      %p63 = por %p61, %p62
      %p64 = scmp.ne.s32.totalorder %s53, %s56
      %p65 = scmp.eq.s32.totalorder %s22, 1
      %p66 = por %p64, %p65
      %p67 = scmp.ne.s32.totalorder %s56, %s57
      %p68 = scmp.eq.s32.totalorder %s22, 0
      %p69 = por %p67, %p68
      %p70 = scmp.ne.s32.totalorder %s56, %s57
      %p71 = scmp.eq.s32.totalorder %s23, 1
      %p72 = por %p70, %p71
      %p74 = scmp.ne.s32.totalorder %s57, %s73
      %p75 = scmp.eq.s32.totalorder %s23, 0
      %p76 = por %p74, %p75
      %s77 = ssub.s32 %s17, %s24
      %p78 = scmp.eq.s32.totalorder %s77, 0
      %s80 = sadd.s32 %s79, 1
      %s81 = scalar_select %p78, %s79, %s80
      %p84 = pneg %p78
      %p85 = scmp.eq.s32.totalorder %s17, 1
      %p86 = por %p84, %p85
      %p87 = scmp.ne.s32.totalorder %s79, %s82
      %p88 = scmp.eq.s32.totalorder %s17, 0
      %p89 = por %p87, %p88
      %p90 = scmp.ne.s32.totalorder %s79, %s82
      %p91 = scmp.eq.s32.totalorder %s22, 1
      %p92 = por %p90, %p91
      %p93 = scmp.ne.s32.totalorder %s82, %s83
      %p94 = scmp.eq.s32.totalorder %s22, 0
      %p95 = por %p93, %p94
      %p96 = scmp.ne.s32.totalorder %s82, %s83
      %p97 = scmp.eq.s32.totalorder %s23, 1
      %p98 = por %p96, %p97
      %p100 = scmp.ne.s32.totalorder %s83, %s99
      %p101 = scmp.eq.s32.totalorder %s23, 0
      %p102 = por %p100, %p101
      %p103 = scmp.le.s32.totalorder 1, %s17
      %p104 = scmp.lt.s32.totalorder %s17, 3
      %p105 = pnand %p103, %p104
      %p106 = pneg %p105
      // Predicated region
      $region9: #{tpu_custom_call.1} parent=5 // pred_check
        _
      $region10: #{tpu_custom_call.1} parent=5 // pred_check_branch
        %108 = sbr.rel (%p105) target = $region12
      $region11: #{tpu_custom_call.1} parent=5 // pred_region
        %s109 = ssub.s32 %s17, 1
      $region12: #{tpu_custom_call.1} parent=5 // pred_fallthru
        _
      %p110 = scmp.lt.s32.totalorder %s17, 2
      // Predicated region
      $region13: #{tpu_custom_call.1} parent=5 // pred_check
        %p111 = pneg %p110
      $region14: #{tpu_custom_call.1} parent=5 // pred_check_branch
        %113 = sbr.rel (%p111) target = $region16
      $region15: #{tpu_custom_call.1} parent=5 // pred_region
        // Predicated region
        $region17: #{tpu_custom_call.1} parent=15 // pred_check
          %p114 = pneg %p37
        $region18: #{tpu_custom_call.1} parent=15 // pred_check_branch
          %116 = sbr.rel (%p114) target = $region20
        $region19: #{tpu_custom_call.1} parent=15 // pred_region
          %s117 = sand.u32 %s27, 1
          %s118 = scalar_lea.sflag [#allocation3], %s117
          %s119 = sand.u32 %s27, 1
          %s120 = smul.addr %s119, 64
          %s121 = scalar_lea.vmem [#allocation2], %s120
          %s122 = smul.u32 4, %s17
          %s124 = ssub.s32 1024, 1024
          %125 = vsyncadd %s118, %s124
          %s126 = smul.addr %s122, 2
          %s127 = smul.addr %s126, 128
          %s128 = scalar_lea.hbm %s0, %s127
          %s129 = sshll.u32 %s121, 4
          %s130 = int_to_ptr.vmem [resolvable:$true] %s129
          %135 = dma.hbm_to_vmem [thread:$0]  %s128, 1024, %s130, %s118, 128, 128, 8
        $region20: #{tpu_custom_call.1} parent=15 // pred_fallthru
          _
        // Predicated region
        $region21: #{tpu_custom_call.1} parent=15 // pred_check
          %p136 = pneg %p63
        $region22: #{tpu_custom_call.1} parent=15 // pred_check_branch
          %138 = sbr.rel (%p136) target = $region24
        $region23: #{tpu_custom_call.1} parent=15 // pred_region
          %s139 = sand.u32 %s53, 1
          %s140 = scalar_lea.sflag [#allocation6], %s139
          %s141 = sand.u32 %s53, 1
          %s142 = smul.addr %s141, 64
          %s143 = scalar_lea.vmem [#allocation5], %s142
          %s144 = smul.u32 4, %s17
          %s146 = ssub.s32 1024, 1024
          %147 = vsyncadd %s140, %s146
          %s148 = smul.addr %s144, 2
          %s149 = smul.addr %s148, 128
          %s150 = scalar_lea.hbm %s1, %s149
          %s151 = sshll.u32 %s143, 4
          %s152 = int_to_ptr.vmem [resolvable:$true] %s151
          %157 = dma.hbm_to_vmem [thread:$0]  %s150, 1024, %s152, %s140, 128, 128, 8
        $region24: #{tpu_custom_call.1} parent=15 // pred_fallthru
          _
      $region16: #{tpu_custom_call.1} parent=5 // pred_fallthru
        _
      %p158 = scmp.le.s32.totalorder 1, %s17
      %p159 = scmp.lt.s32.totalorder %s17, 3
      %p160 = pnand %p158, %p159
      %p161 = pneg %p160
      // Predicated region
      $region25: #{tpu_custom_call.1} parent=5 // pred_check
        _
      $region26: #{tpu_custom_call.1} parent=5 // pred_check_branch
        %163 = sbr.rel (%p160) target = $region28
      $region27: #{tpu_custom_call.1} parent=5 // pred_region
        %s164 = ssub.s32 %s17, 1
        %s165 = sand.u32 %s30, 1
        %s166 = scalar_lea.sflag [#allocation3], %s165
        %s167 = sand.u32 %s30, 1
        %s168 = smul.addr %s167, 64
        %s169 = scalar_lea.vmem [#allocation2], %s168
        // Predicated region
        $region29: #{tpu_custom_call.1} parent=27 // pred_check
          %p170 = pneg %p43
        $region30: #{tpu_custom_call.1} parent=27 // pred_check_branch
          %172 = sbr.rel (%p170) target = $region32
        $region31: #{tpu_custom_call.1} parent=27 // pred_region
          %173 = dma.done %s166, 1024
        $region32: #{tpu_custom_call.1} parent=27 // pred_fallthru
          _
        %s174 = sand.u32 %s56, 1
        %s175 = scalar_lea.sflag [#allocation6], %s174
        %s176 = sand.u32 %s56, 1
        %s177 = smul.addr %s176, 64
        %s178 = scalar_lea.vmem [#allocation5], %s177
        // Predicated region
        $region33: #{tpu_custom_call.1} parent=27 // pred_check
          %p179 = pneg %p69
        $region34: #{tpu_custom_call.1} parent=27 // pred_check_branch
          %181 = sbr.rel (%p179) target = $region36
        $region35: #{tpu_custom_call.1} parent=27 // pred_region
          %182 = dma.done %s175, 1024
        $region36: #{tpu_custom_call.1} parent=27 // pred_fallthru
          _
        %s183 = sand.u32 %s30, 1
        %s184 = scalar_lea.sflag [#allocation3], %s183
        %s185 = sand.u32 %s30, 1
        %s186 = smul.addr %s185, 64
        %s187 = scalar_lea.vmem [#allocation2], %s186
        %p188 = pneg %p43
        %p189 = pneg %p40
        %s190 = sand.u32 %s56, 1
        %s191 = scalar_lea.sflag [#allocation6], %s190
        %s192 = sand.u32 %s56, 1
        %s193 = smul.addr %s192, 64
        %s194 = scalar_lea.vmem [#allocation5], %s193
        %p195 = pneg %p69
        %p196 = pneg %p66
        %p197 = pneg %p95
        %p198 = pneg %p92
        %s199 = sand.u32 %s82, 1
        %s200 = scalar_lea.sflag [#allocation4], %s199
        %s201 = sand.u32 %s82, 1
        %s202 = smul.addr %s201, 64
        %s203 = scalar_lea.vmem [#allocation7], %s202
        %s204 = smul.u32 4, %s22
        %s205 = smul.u32 4, %s22
        %s206 = smul.u32 4, %s22
        %v207 = vld [vmem:[%s169] sm:$0xff]
        %v208 = vld [vmem:[%s169 + $0x8] sm:$0xff]
        %v209 = vld [vmem:[%s169 + $0x10] sm:$0xff]
        %v210 = vld [vmem:[%s169 + $0x18] sm:$0xff]
        %v211 = vld [vmem:[%s169 + $0x20] sm:$0xff]
        %v212 = vld [vmem:[%s169 + $0x28] sm:$0xff]
        %v213 = vld [vmem:[%s169 + $0x30] sm:$0xff]
        %v214 = vld [vmem:[%s169 + $0x38] sm:$0xff]
        %v215 = vld [vmem:[%s178] sm:$0xff]
        %v216 = vld [vmem:[%s178 + $0x8] sm:$0xff]
        %v217 = vld [vmem:[%s178 + $0x10] sm:$0xff]
        %v218 = vld [vmem:[%s178 + $0x18] sm:$0xff]
        %v219 = vld [vmem:[%s178 + $0x20] sm:$0xff]
        %v220 = vld [vmem:[%s178 + $0x28] sm:$0xff]
        %v221 = vld [vmem:[%s178 + $0x30] sm:$0xff]
        %v222 = vld [vmem:[%s178 + $0x38] sm:$0xff]
        %v223 = vlaneseq
        %v224 = vand.u32 %v223, 127
        %v225 = vlaneseq
        %v226 = vshrl.u32 %v225, 7
        %v227 = vadd.s32 %v226, 8
        %vm228 = vcmp.eq.s32.totalorder %v224, 0
        %vm229 = vcmp.eq.s32.totalorder %v224, 15
        %vm230 = vcmp.eq.s32.totalorder %v226, 0
        %vm231 = vcmp.eq.s32.totalorder %v227, 0
        %vm232 = vcmp.eq.s32.totalorder %v226, 15
        %vm233 = vcmp.eq.s32.totalorder %v227, 15
        %vm234 = vcmask 1047680
        %235 = vrot.lane.b32.xlu0 %v207, 16
        %v236 = vpop.permute.xlu0 %235
        %v237 = vsel %vm234, %v236, %v207
        %238 = vrot.lane.b32.xlu0 %v208, 16
        %v239 = vpop.permute.xlu0 %238
        %v240 = vsel %vm234, %v239, %v208
        %241 = vrot.lane.b32.xlu0 %v209, 16
        %v242 = vpop.permute.xlu0 %241
        %v243 = vsel %vm234, %v242, %v209
        %244 = vrot.lane.b32.xlu0 %v210, 16
        %v245 = vpop.permute.xlu0 %244
        %v246 = vsel %vm234, %v245, %v210
        %247 = vrot.lane.b32.xlu0 %v211, 16
        %v248 = vpop.permute.xlu0 %247
        %v249 = vsel %vm234, %v248, %v211
        %250 = vrot.lane.b32.xlu0 %v212, 16
        %v251 = vpop.permute.xlu0 %250
        %v252 = vsel %vm234, %v251, %v212
        %253 = vrot.lane.b32.xlu0 %v213, 16
        %v254 = vpop.permute.xlu0 %253
        %v255 = vsel %vm234, %v254, %v213
        %256 = vrot.lane.b32.xlu0 %v214, 16
        %v257 = vpop.permute.xlu0 %256
        %v258 = vsel %vm234, %v257, %v214
        %259 = vrot.lane.b32.xlu0 %v237, 16
        %v260 = vpop.permute.xlu0 %259
        %261 = vrot.lane.b32.xlu0 %v240, 16
        %v262 = vpop.permute.xlu0 %261
        %263 = vrot.lane.b32.xlu0 %v243, 16
        %v264 = vpop.permute.xlu0 %263
        %265 = vrot.lane.b32.xlu0 %v246, 16
        %v266 = vpop.permute.xlu0 %265
        %267 = vrot.lane.b32.xlu0 %v249, 16
        %v268 = vpop.permute.xlu0 %267
        %269 = vrot.lane.b32.xlu0 %v252, 16
        %v270 = vpop.permute.xlu0 %269
        %271 = vrot.lane.b32.xlu0 %v255, 16
        %v272 = vpop.permute.xlu0 %271
        %273 = vrot.lane.b32.xlu0 %v258, 16
        %v274 = vpop.permute.xlu0 %273
        %v275 = vsel %vm234, %v260, %v207
        %v276 = vsel %vm234, %v262, %v208
        %v277 = vsel %vm234, %v264, %v209
        %v278 = vsel %vm234, %v266, %v210
        %v279 = vsel %vm234, %v268, %v211
        %v280 = vsel %vm234, %v270, %v212
        %v281 = vsel %vm234, %v272, %v213
        %v282 = vsel %vm234, %v274, %v214
        %291 = vrot.lane.b32.xlu0 %v275, 127
        %v292 = vpop.permute.xlu0 %291
        %293 = vrot.lane.b32.xlu0 %v276, 127
        %v294 = vpop.permute.xlu0 %293
        %295 = vrot.lane.b32.xlu0 %v277, 127
        %v296 = vpop.permute.xlu0 %295
        %297 = vrot.lane.b32.xlu0 %v278, 127
        %v298 = vpop.permute.xlu0 %297
        %299 = vrot.lane.b32.xlu0 %v279, 127
        %v300 = vpop.permute.xlu0 %299
        %301 = vrot.lane.b32.xlu0 %v280, 127
        %v302 = vpop.permute.xlu0 %301
        %303 = vrot.lane.b32.xlu0 %v281, 127
        %v304 = vpop.permute.xlu0 %303
        %305 = vrot.lane.b32.xlu0 %v282, 127
        %v306 = vpop.permute.xlu0 %305
        %315 = vrot.lane.b32.xlu0 %v275, 113
        %v316 = vpop.permute.xlu0 %315
        %317 = vrot.lane.b32.xlu0 %v276, 113
        %v318 = vpop.permute.xlu0 %317
        %319 = vrot.lane.b32.xlu0 %v277, 113
        %v320 = vpop.permute.xlu0 %319
        %321 = vrot.lane.b32.xlu0 %v278, 113
        %v322 = vpop.permute.xlu0 %321
        %323 = vrot.lane.b32.xlu0 %v279, 113
        %v324 = vpop.permute.xlu0 %323
        %325 = vrot.lane.b32.xlu0 %v280, 113
        %v326 = vpop.permute.xlu0 %325
        %327 = vrot.lane.b32.xlu0 %v281, 113
        %v328 = vpop.permute.xlu0 %327
        %329 = vrot.lane.b32.xlu0 %v282, 113
        %v330 = vpop.permute.xlu0 %329
        %v339 = vsel %vm228, %v292, %v316
        %v340 = vsel %vm228, %v294, %v318
        %v341 = vsel %vm228, %v296, %v320
        %v342 = vsel %vm228, %v298, %v322
        %v343 = vsel %vm228, %v300, %v324
        %v344 = vsel %vm228, %v302, %v326
        %v345 = vsel %vm228, %v304, %v328
        %v346 = vsel %vm228, %v306, %v330
        %v347 = vsel %vm229, %v316, %v292
        %v348 = vsel %vm229, %v318, %v294
        %v349 = vsel %vm229, %v320, %v296
        %v350 = vsel %vm229, %v322, %v298
        %v351 = vsel %vm229, %v324, %v300
        %v352 = vsel %vm229, %v326, %v302
        %v353 = vsel %vm229, %v328, %v304
        %v354 = vsel %vm229, %v330, %v306
        %355 = vrot.lane.b32.xlu0 %v215, 16
        %v356 = vpop.permute.xlu0 %355
        %v357 = vsel %vm234, %v356, %v215
        %358 = vrot.lane.b32.xlu0 %v216, 16
        %v359 = vpop.permute.xlu0 %358
        %v360 = vsel %vm234, %v359, %v216
        %361 = vrot.lane.b32.xlu0 %v217, 16
        %v362 = vpop.permute.xlu0 %361
        %v363 = vsel %vm234, %v362, %v217
        %364 = vrot.lane.b32.xlu0 %v218, 16
        %v365 = vpop.permute.xlu0 %364
        %v366 = vsel %vm234, %v365, %v218
        %367 = vrot.lane.b32.xlu0 %v219, 16
        %v368 = vpop.permute.xlu0 %367
        %v369 = vsel %vm234, %v368, %v219
        %370 = vrot.lane.b32.xlu0 %v220, 16
        %v371 = vpop.permute.xlu0 %370
        %v372 = vsel %vm234, %v371, %v220
        %373 = vrot.lane.b32.xlu0 %v221, 16
        %v374 = vpop.permute.xlu0 %373
        %v375 = vsel %vm234, %v374, %v221
        %376 = vrot.lane.b32.xlu0 %v222, 16
        %v377 = vpop.permute.xlu0 %376
        %v378 = vsel %vm234, %v377, %v222
        %379 = vrot.lane.b32.xlu0 %v357, 16
        %v380 = vpop.permute.xlu0 %379
        %381 = vrot.lane.b32.xlu0 %v360, 16
        %v382 = vpop.permute.xlu0 %381
        %383 = vrot.lane.b32.xlu0 %v363, 16
        %v384 = vpop.permute.xlu0 %383
        %385 = vrot.lane.b32.xlu0 %v366, 16
        %v386 = vpop.permute.xlu0 %385
        %387 = vrot.lane.b32.xlu0 %v369, 16
        %v388 = vpop.permute.xlu0 %387
        %389 = vrot.lane.b32.xlu0 %v372, 16
        %v390 = vpop.permute.xlu0 %389
        %391 = vrot.lane.b32.xlu0 %v375, 16
        %v392 = vpop.permute.xlu0 %391
        %393 = vrot.lane.b32.xlu0 %v378, 16
        %v394 = vpop.permute.xlu0 %393
        %v395 = vsel %vm234, %v380, %v215
        %v396 = vsel %vm234, %v382, %v216
        %v397 = vsel %vm234, %v384, %v217
        %v398 = vsel %vm234, %v386, %v218
        %v399 = vsel %vm234, %v388, %v219
        %v400 = vsel %vm234, %v390, %v220
        %v401 = vsel %vm234, %v392, %v221
        %v402 = vsel %vm234, %v394, %v222
        %411 = vrot.lane.b32.xlu0 %v395, 127
        %v412 = vpop.permute.xlu0 %411
        %413 = vrot.lane.b32.xlu0 %v396, 127
        %v414 = vpop.permute.xlu0 %413
        %415 = vrot.lane.b32.xlu0 %v397, 127
        %v416 = vpop.permute.xlu0 %415
        %417 = vrot.lane.b32.xlu0 %v398, 127
        %v418 = vpop.permute.xlu0 %417
        %419 = vrot.lane.b32.xlu0 %v399, 127
        %v420 = vpop.permute.xlu0 %419
        %421 = vrot.lane.b32.xlu0 %v400, 127
        %v422 = vpop.permute.xlu0 %421
        %423 = vrot.lane.b32.xlu0 %v401, 127
        %v424 = vpop.permute.xlu0 %423
        %425 = vrot.lane.b32.xlu0 %v402, 127
        %v426 = vpop.permute.xlu0 %425
        %435 = vrot.lane.b32.xlu0 %v395, 113
        %v436 = vpop.permute.xlu0 %435
        %437 = vrot.lane.b32.xlu0 %v396, 113
        %v438 = vpop.permute.xlu0 %437
        %439 = vrot.lane.b32.xlu0 %v397, 113
        %v440 = vpop.permute.xlu0 %439
        %441 = vrot.lane.b32.xlu0 %v398, 113
        %v442 = vpop.permute.xlu0 %441
        %443 = vrot.lane.b32.xlu0 %v399, 113
        %v444 = vpop.permute.xlu0 %443
        %445 = vrot.lane.b32.xlu0 %v400, 113
        %v446 = vpop.permute.xlu0 %445
        %447 = vrot.lane.b32.xlu0 %v401, 113
        %v448 = vpop.permute.xlu0 %447
        %449 = vrot.lane.b32.xlu0 %v402, 113
        %v450 = vpop.permute.xlu0 %449
        %v459 = vsel %vm228, %v412, %v436
        %v460 = vsel %vm228, %v414, %v438
        %v461 = vsel %vm228, %v416, %v440
        %v462 = vsel %vm228, %v418, %v442
        %v463 = vsel %vm228, %v420, %v444
        %v464 = vsel %vm228, %v422, %v446
        %v465 = vsel %vm228, %v424, %v448
        %v466 = vsel %vm228, %v426, %v450
        %v467 = vsel %vm229, %v436, %v412
        %v468 = vsel %vm229, %v438, %v414
        %v469 = vsel %vm229, %v440, %v416
        %v470 = vsel %vm229, %v442, %v418
        %v471 = vsel %vm229, %v444, %v420
        %v472 = vsel %vm229, %v446, %v422
        %v473 = vsel %vm229, %v448, %v424
        %v474 = vsel %vm229, %v450, %v426
        %v475 = vadd.f32 %v339, %v207
        %v476 = vadd.f32 %v340, %v208
        %v477 = vadd.f32 %v341, %v209
        %v478 = vadd.f32 %v342, %v210
        %v479 = vadd.f32 %v343, %v211
        %v480 = vadd.f32 %v344, %v212
        %v481 = vadd.f32 %v345, %v213
        %v482 = vadd.f32 %v346, %v214
        %v483 = vadd.f32 %v475, %v347
        %v484 = vadd.f32 %v476, %v348
        %v485 = vadd.f32 %v477, %v349
        %v486 = vadd.f32 %v478, %v350
        %v487 = vadd.f32 %v479, %v351
        %v488 = vadd.f32 %v480, %v352
        %v489 = vadd.f32 %v481, %v353
        %v490 = vadd.f32 %v482, %v354
        %v491 = vadd.f32 %v459, %v215
        %v492 = vadd.f32 %v460, %v216
        %v493 = vadd.f32 %v461, %v217
        %v494 = vadd.f32 %v462, %v218
        %v495 = vadd.f32 %v463, %v219
        %v496 = vadd.f32 %v464, %v220
        %v497 = vadd.f32 %v465, %v221
        %v498 = vadd.f32 %v466, %v222
        %v499 = vadd.f32 %v491, %v467
        %v500 = vadd.f32 %v492, %v468
        %v501 = vadd.f32 %v493, %v469
        %v502 = vadd.f32 %v494, %v470
        %v503 = vadd.f32 %v495, %v471
        %v504 = vadd.f32 %v496, %v472
        %v505 = vadd.f32 %v497, %v473
        %v506 = vadd.f32 %v498, %v474
        %v507 = vmul.f32 %v339, %v339
        %v508 = vmul.f32 %v340, %v340
        %v509 = vmul.f32 %v341, %v341
        %v510 = vmul.f32 %v342, %v342
        %v511 = vmul.f32 %v343, %v343
        %v512 = vmul.f32 %v344, %v344
        %v513 = vmul.f32 %v345, %v345
        %v514 = vmul.f32 %v346, %v346
        %v515 = vmul.f32 %v207, %v207
        %v516 = vmul.f32 %v208, %v208
        %v517 = vmul.f32 %v209, %v209
        %v518 = vmul.f32 %v210, %v210
        %v519 = vmul.f32 %v211, %v211
        %v520 = vmul.f32 %v212, %v212
        %v521 = vmul.f32 %v213, %v213
        %v522 = vmul.f32 %v214, %v214
        %v523 = vadd.f32 %v507, %v515
        %v524 = vadd.f32 %v508, %v516
        %v525 = vadd.f32 %v509, %v517
        %v526 = vadd.f32 %v510, %v518
        %v527 = vadd.f32 %v511, %v519
        %v528 = vadd.f32 %v512, %v520
        %v529 = vadd.f32 %v513, %v521
        %v530 = vadd.f32 %v514, %v522
        %v531 = vmul.f32 %v347, %v347
        %v532 = vmul.f32 %v348, %v348
        %v533 = vmul.f32 %v349, %v349
        %v534 = vmul.f32 %v350, %v350
        %v535 = vmul.f32 %v351, %v351
        %v536 = vmul.f32 %v352, %v352
        %v537 = vmul.f32 %v353, %v353
        %v538 = vmul.f32 %v354, %v354
        %v539 = vadd.f32 %v523, %v531
        %v540 = vadd.f32 %v524, %v532
        %v541 = vadd.f32 %v525, %v533
        %v542 = vadd.f32 %v526, %v534
        %v543 = vadd.f32 %v527, %v535
        %v544 = vadd.f32 %v528, %v536
        %v545 = vadd.f32 %v529, %v537
        %v546 = vadd.f32 %v530, %v538
        %v547 = vmul.f32 %v459, %v459
        %v548 = vmul.f32 %v460, %v460
        %v549 = vmul.f32 %v461, %v461
        %v550 = vmul.f32 %v462, %v462
        %v551 = vmul.f32 %v463, %v463
        %v552 = vmul.f32 %v464, %v464
        %v553 = vmul.f32 %v465, %v465
        %v554 = vmul.f32 %v466, %v466
        %v555 = vmul.f32 %v215, %v215
        %v556 = vmul.f32 %v216, %v216
        %v557 = vmul.f32 %v217, %v217
        %v558 = vmul.f32 %v218, %v218
        %v559 = vmul.f32 %v219, %v219
        %v560 = vmul.f32 %v220, %v220
        %v561 = vmul.f32 %v221, %v221
        %v562 = vmul.f32 %v222, %v222
        %v563 = vadd.f32 %v547, %v555
        %v564 = vadd.f32 %v548, %v556
        %v565 = vadd.f32 %v549, %v557
        %v566 = vadd.f32 %v550, %v558
        %v567 = vadd.f32 %v551, %v559
        %v568 = vadd.f32 %v552, %v560
        %v569 = vadd.f32 %v553, %v561
        %v570 = vadd.f32 %v554, %v562
        %v571 = vmul.f32 %v467, %v467
        %v572 = vmul.f32 %v468, %v468
        %v573 = vmul.f32 %v469, %v469
        %v574 = vmul.f32 %v470, %v470
        %v575 = vmul.f32 %v471, %v471
        %v576 = vmul.f32 %v472, %v472
        %v577 = vmul.f32 %v473, %v473
        %v578 = vmul.f32 %v474, %v474
        %v579 = vadd.f32 %v563, %v571
        %v580 = vadd.f32 %v564, %v572
        %v581 = vadd.f32 %v565, %v573
        %v582 = vadd.f32 %v566, %v574
        %v583 = vadd.f32 %v567, %v575
        %v584 = vadd.f32 %v568, %v576
        %v585 = vadd.f32 %v569, %v577
        %v586 = vadd.f32 %v570, %v578
        %v587 = vmul.f32 %v339, %v459
        %v588 = vmul.f32 %v340, %v460
        %v589 = vmul.f32 %v341, %v461
        %v590 = vmul.f32 %v342, %v462
        %v591 = vmul.f32 %v343, %v463
        %v592 = vmul.f32 %v344, %v464
        %v593 = vmul.f32 %v345, %v465
        %v594 = vmul.f32 %v346, %v466
        %v595 = vmul.f32 %v207, %v215
        %v596 = vmul.f32 %v208, %v216
        %v597 = vmul.f32 %v209, %v217
        %v598 = vmul.f32 %v210, %v218
        %v599 = vmul.f32 %v211, %v219
        %v600 = vmul.f32 %v212, %v220
        %v601 = vmul.f32 %v213, %v221
        %v602 = vmul.f32 %v214, %v222
        %v603 = vadd.f32 %v587, %v595
        %v604 = vadd.f32 %v588, %v596
        %v605 = vadd.f32 %v589, %v597
        %v606 = vadd.f32 %v590, %v598
        %v607 = vadd.f32 %v591, %v599
        %v608 = vadd.f32 %v592, %v600
        %v609 = vadd.f32 %v593, %v601
        %v610 = vadd.f32 %v594, %v602
        %v611 = vmul.f32 %v347, %v467
        %v612 = vmul.f32 %v348, %v468
        %v613 = vmul.f32 %v349, %v469
        %v614 = vmul.f32 %v350, %v470
        %v615 = vmul.f32 %v351, %v471
        %v616 = vmul.f32 %v352, %v472
        %v617 = vmul.f32 %v353, %v473
        %v618 = vmul.f32 %v354, %v474
        %v619 = vadd.f32 %v603, %v611
        %v620 = vadd.f32 %v604, %v612
        %v621 = vadd.f32 %v605, %v613
        %v622 = vadd.f32 %v606, %v614
        %v623 = vadd.f32 %v607, %v615
        %v624 = vadd.f32 %v608, %v616
        %v625 = vadd.f32 %v609, %v617
        %v626 = vadd.f32 %v610, %v618
        %v627 = vrot.slane %v483, 7
        %v628 = vrot.slane %v485, 7
        %v629 = vrot.slane %v487, 7
        %v630 = vrot.slane %v489, 7
        %v631 = vrot.slane %v484, 7
        %v632 = vrot.slane %v486, 7
        %v633 = vrot.slane %v488, 7
        %v634 = vrot.slane %v490, 7
        %vm635 = vcmp.lt.s32.totalorder %v226, 1
        %v636 = vsel %vm635, %v627, %v631
        %v637 = vsel %vm635, %v628, %v632
        %v638 = vsel %vm635, %v629, %v633
        %v639 = vsel %vm635, %v630, %v634
        %v640 = vsel %vm635, %v631, %v627
        %v641 = vsel %vm635, %v632, %v628
        %v642 = vsel %vm635, %v633, %v629
        %v643 = vsel %vm635, %v634, %v630
        %v644 = vrot.slane %v483, 1
        %v645 = vrot.slane %v485, 1
        %v646 = vrot.slane %v487, 1
        %v647 = vrot.slane %v489, 1
        %v648 = vrot.slane %v484, 1
        %v649 = vrot.slane %v486, 1
        %v650 = vrot.slane %v488, 1
        %v651 = vrot.slane %v490, 1
        %vm652 = vcmp.lt.s32.totalorder %v226, 7
        %v653 = vsel %vm652, %v644, %v648
        %v654 = vsel %vm652, %v645, %v649
        %v655 = vsel %vm652, %v646, %v650
        %v656 = vsel %vm652, %v647, %v651
        %v657 = vsel %vm652, %v648, %v644
        %v658 = vsel %vm652, %v649, %v645
        %v659 = vsel %vm652, %v650, %v646
        %v660 = vsel %vm652, %v651, %v647
        %v661 = vsel %vm230, %v653, %v640
        %v662 = vsel %vm231, %v657, %v636
        %v663 = vsel %vm230, %v654, %v641
        %v664 = vsel %vm231, %v658, %v637
        %v665 = vsel %vm230, %v655, %v642
        %v666 = vsel %vm231, %v659, %v638
        %v667 = vsel %vm230, %v656, %v643
        %v668 = vsel %vm231, %v660, %v639
        %v669 = vsel %vm232, %v640, %v653
        %v670 = vsel %vm233, %v636, %v657
        %v671 = vsel %vm232, %v641, %v654
        %v672 = vsel %vm233, %v637, %v658
        %v673 = vsel %vm232, %v642, %v655
        %v674 = vsel %vm233, %v638, %v659
        %v675 = vsel %vm232, %v643, %v656
        %v676 = vsel %vm233, %v639, %v660
        %v677 = vadd.f32 %v661, %v483
        %v678 = vadd.f32 %v662, %v484
        %v679 = vadd.f32 %v663, %v485
        %v680 = vadd.f32 %v664, %v486
        %v681 = vadd.f32 %v665, %v487
        %v682 = vadd.f32 %v666, %v488
        %v683 = vadd.f32 %v667, %v489
        %v684 = vadd.f32 %v668, %v490
        %v685 = vadd.f32 %v677, %v669
        %v686 = vadd.f32 %v678, %v670
        %v687 = vadd.f32 %v679, %v671
        %v688 = vadd.f32 %v680, %v672
        %v689 = vadd.f32 %v681, %v673
        %v690 = vadd.f32 %v682, %v674
        %v691 = vadd.f32 %v683, %v675
        %v692 = vadd.f32 %v684, %v676
        %v693 = vrot.slane %v499, 7
        %v694 = vrot.slane %v501, 7
        %v695 = vrot.slane %v503, 7
        %v696 = vrot.slane %v505, 7
        %v697 = vrot.slane %v500, 7
        %v698 = vrot.slane %v502, 7
        %v699 = vrot.slane %v504, 7
        %v700 = vrot.slane %v506, 7
        %v701 = vsel %vm635, %v693, %v697
        %v702 = vsel %vm635, %v694, %v698
        %v703 = vsel %vm635, %v695, %v699
        %v704 = vsel %vm635, %v696, %v700
        %v705 = vsel %vm635, %v697, %v693
        %v706 = vsel %vm635, %v698, %v694
        %v707 = vsel %vm635, %v699, %v695
        %v708 = vsel %vm635, %v700, %v696
        %v709 = vrot.slane %v499, 1
        %v710 = vrot.slane %v501, 1
        %v711 = vrot.slane %v503, 1
        %v712 = vrot.slane %v505, 1
        %v713 = vrot.slane %v500, 1
        %v714 = vrot.slane %v502, 1
        %v715 = vrot.slane %v504, 1
        %v716 = vrot.slane %v506, 1
        %v717 = vsel %vm652, %v709, %v713
        %v718 = vsel %vm652, %v710, %v714
        %v719 = vsel %vm652, %v711, %v715
        %v720 = vsel %vm652, %v712, %v716
        %v721 = vsel %vm652, %v713, %v709
        %v722 = vsel %vm652, %v714, %v710
        %v723 = vsel %vm652, %v715, %v711
        %v724 = vsel %vm652, %v716, %v712
        %v725 = vsel %vm230, %v717, %v705
        %v726 = vsel %vm231, %v721, %v701
        %v727 = vsel %vm230, %v718, %v706
        %v728 = vsel %vm231, %v722, %v702
        %v729 = vsel %vm230, %v719, %v707
        %v730 = vsel %vm231, %v723, %v703
        %v731 = vsel %vm230, %v720, %v708
        %v732 = vsel %vm231, %v724, %v704
        %v733 = vsel %vm232, %v705, %v717
        %v734 = vsel %vm233, %v701, %v721
        %v735 = vsel %vm232, %v706, %v718
        %v736 = vsel %vm233, %v702, %v722
        %v737 = vsel %vm232, %v707, %v719
        %v738 = vsel %vm233, %v703, %v723
        %v739 = vsel %vm232, %v708, %v720
        %v740 = vsel %vm233, %v704, %v724
        %v741 = vadd.f32 %v725, %v499
        %v742 = vadd.f32 %v726, %v500
        %v743 = vadd.f32 %v727, %v501
        %v744 = vadd.f32 %v728, %v502
        %v745 = vadd.f32 %v729, %v503
        %v746 = vadd.f32 %v730, %v504
        %v747 = vadd.f32 %v731, %v505
        %v748 = vadd.f32 %v732, %v506
        %v749 = vadd.f32 %v741, %v733
        %v750 = vadd.f32 %v742, %v734
        %v751 = vadd.f32 %v743, %v735
        %v752 = vadd.f32 %v744, %v736
        %v753 = vadd.f32 %v745, %v737
        %v754 = vadd.f32 %v746, %v738
        %v755 = vadd.f32 %v747, %v739
        %v756 = vadd.f32 %v748, %v740
        %v757 = vrot.slane %v539, 7
        %v758 = vrot.slane %v541, 7
        %v759 = vrot.slane %v543, 7
        %v760 = vrot.slane %v545, 7
        %v761 = vrot.slane %v540, 7
        %v762 = vrot.slane %v542, 7
        %v763 = vrot.slane %v544, 7
        %v764 = vrot.slane %v546, 7
        %v765 = vsel %vm635, %v757, %v761
        %v766 = vsel %vm635, %v758, %v762
        %v767 = vsel %vm635, %v759, %v763
        %v768 = vsel %vm635, %v760, %v764
        %v769 = vsel %vm635, %v761, %v757
        %v770 = vsel %vm635, %v762, %v758
        %v771 = vsel %vm635, %v763, %v759
        %v772 = vsel %vm635, %v764, %v760
        %v773 = vrot.slane %v539, 1
        %v774 = vrot.slane %v541, 1
        %v775 = vrot.slane %v543, 1
        %v776 = vrot.slane %v545, 1
        %v777 = vrot.slane %v540, 1
        %v778 = vrot.slane %v542, 1
        %v779 = vrot.slane %v544, 1
        %v780 = vrot.slane %v546, 1
        %v781 = vsel %vm652, %v773, %v777
        %v782 = vsel %vm652, %v774, %v778
        %v783 = vsel %vm652, %v775, %v779
        %v784 = vsel %vm652, %v776, %v780
        %v785 = vsel %vm652, %v777, %v773
        %v786 = vsel %vm652, %v778, %v774
        %v787 = vsel %vm652, %v779, %v775
        %v788 = vsel %vm652, %v780, %v776
        %v789 = vsel %vm230, %v781, %v769
        %v790 = vsel %vm231, %v785, %v765
        %v791 = vsel %vm230, %v782, %v770
        %v792 = vsel %vm231, %v786, %v766
        %v793 = vsel %vm230, %v783, %v771
        %v794 = vsel %vm231, %v787, %v767
        %v795 = vsel %vm230, %v784, %v772
        %v796 = vsel %vm231, %v788, %v768
        %v797 = vsel %vm232, %v769, %v781
        %v798 = vsel %vm233, %v765, %v785
        %v799 = vsel %vm232, %v770, %v782
        %v800 = vsel %vm233, %v766, %v786
        %v801 = vsel %vm232, %v771, %v783
        %v802 = vsel %vm233, %v767, %v787
        %v803 = vsel %vm232, %v772, %v784
        %v804 = vsel %vm233, %v768, %v788
        %v805 = vadd.f32 %v789, %v539
        %v806 = vadd.f32 %v790, %v540
        %v807 = vadd.f32 %v791, %v541
        %v808 = vadd.f32 %v792, %v542
        %v809 = vadd.f32 %v793, %v543
        %v810 = vadd.f32 %v794, %v544
        %v811 = vadd.f32 %v795, %v545
        %v812 = vadd.f32 %v796, %v546
        %v813 = vadd.f32 %v805, %v797
        %v814 = vadd.f32 %v806, %v798
        %v815 = vadd.f32 %v807, %v799
        %v816 = vadd.f32 %v808, %v800
        %v817 = vadd.f32 %v809, %v801
        %v818 = vadd.f32 %v810, %v802
        %v819 = vadd.f32 %v811, %v803
        %v820 = vadd.f32 %v812, %v804
        %v821 = vrot.slane %v579, 7
        %v822 = vrot.slane %v581, 7
        %v823 = vrot.slane %v583, 7
        %v824 = vrot.slane %v585, 7
        %v825 = vrot.slane %v580, 7
        %v826 = vrot.slane %v582, 7
        %v827 = vrot.slane %v584, 7
        %v828 = vrot.slane %v586, 7
        %v829 = vsel %vm635, %v821, %v825
        %v830 = vsel %vm635, %v822, %v826
        %v831 = vsel %vm635, %v823, %v827
        %v832 = vsel %vm635, %v824, %v828
        %v833 = vsel %vm635, %v825, %v821
        %v834 = vsel %vm635, %v826, %v822
        %v835 = vsel %vm635, %v827, %v823
        %v836 = vsel %vm635, %v828, %v824
        %v837 = vrot.slane %v579, 1
        %v838 = vrot.slane %v581, 1
        %v839 = vrot.slane %v583, 1
        %v840 = vrot.slane %v585, 1
        %v841 = vrot.slane %v580, 1
        %v842 = vrot.slane %v582, 1
        %v843 = vrot.slane %v584, 1
        %v844 = vrot.slane %v586, 1
        %v845 = vsel %vm652, %v837, %v841
        %v846 = vsel %vm652, %v838, %v842
        %v847 = vsel %vm652, %v839, %v843
        %v848 = vsel %vm652, %v840, %v844
        %v849 = vsel %vm652, %v841, %v837
        %v850 = vsel %vm652, %v842, %v838
        %v851 = vsel %vm652, %v843, %v839
        %v852 = vsel %vm652, %v844, %v840
        %v853 = vsel %vm230, %v845, %v833
        %v854 = vsel %vm231, %v849, %v829
        %v855 = vsel %vm230, %v846, %v834
        %v856 = vsel %vm231, %v850, %v830
        %v857 = vsel %vm230, %v847, %v835
        %v858 = vsel %vm231, %v851, %v831
        %v859 = vsel %vm230, %v848, %v836
        %v860 = vsel %vm231, %v852, %v832
        %v861 = vsel %vm232, %v833, %v845
        %v862 = vsel %vm233, %v829, %v849
        %v863 = vsel %vm232, %v834, %v846
        %v864 = vsel %vm233, %v830, %v850
        %v865 = vsel %vm232, %v835, %v847
        %v866 = vsel %vm233, %v831, %v851
        %v867 = vsel %vm232, %v836, %v848
        %v868 = vsel %vm233, %v832, %v852
        %v869 = vadd.f32 %v853, %v579
        %v870 = vadd.f32 %v854, %v580
        %v871 = vadd.f32 %v855, %v581
        %v872 = vadd.f32 %v856, %v582
        %v873 = vadd.f32 %v857, %v583
        %v874 = vadd.f32 %v858, %v584
        %v875 = vadd.f32 %v859, %v585
        %v876 = vadd.f32 %v860, %v586
        %v877 = vadd.f32 %v869, %v861
        %v878 = vadd.f32 %v870, %v862
        %v879 = vadd.f32 %v871, %v863
        %v880 = vadd.f32 %v872, %v864
        %v881 = vadd.f32 %v873, %v865
        %v882 = vadd.f32 %v874, %v866
        %v883 = vadd.f32 %v875, %v867
        %v884 = vadd.f32 %v876, %v868
        %v885 = vrot.slane %v619, 7
        %v886 = vrot.slane %v621, 7
        %v887 = vrot.slane %v623, 7
        %v888 = vrot.slane %v625, 7
        %v889 = vrot.slane %v620, 7
        %v890 = vrot.slane %v622, 7
        %v891 = vrot.slane %v624, 7
        %v892 = vrot.slane %v626, 7
        %v893 = vsel %vm635, %v885, %v889
        %v894 = vsel %vm635, %v886, %v890
        %v895 = vsel %vm635, %v887, %v891
        %v896 = vsel %vm635, %v888, %v892
        %v897 = vsel %vm635, %v889, %v885
        %v898 = vsel %vm635, %v890, %v886
        %v899 = vsel %vm635, %v891, %v887
        %v900 = vsel %vm635, %v892, %v888
        %v901 = vrot.slane %v619, 1
        %v902 = vrot.slane %v621, 1
        %v903 = vrot.slane %v623, 1
        %v904 = vrot.slane %v625, 1
        %v905 = vrot.slane %v620, 1
        %v906 = vrot.slane %v622, 1
        %v907 = vrot.slane %v624, 1
        %v908 = vrot.slane %v626, 1
        %v909 = vsel %vm652, %v901, %v905
        %v910 = vsel %vm652, %v902, %v906
        %v911 = vsel %vm652, %v903, %v907
        %v912 = vsel %vm652, %v904, %v908
        %v913 = vsel %vm652, %v905, %v901
        %v914 = vsel %vm652, %v906, %v902
        %v915 = vsel %vm652, %v907, %v903
        %v916 = vsel %vm652, %v908, %v904
        %v917 = vsel %vm230, %v909, %v897
        %v918 = vsel %vm231, %v913, %v893
        %v919 = vsel %vm230, %v910, %v898
        %v920 = vsel %vm231, %v914, %v894
        %v921 = vsel %vm230, %v911, %v899
        %v922 = vsel %vm231, %v915, %v895
        %v923 = vsel %vm230, %v912, %v900
        %v924 = vsel %vm231, %v916, %v896
        %v925 = vsel %vm232, %v897, %v909
        %v926 = vsel %vm233, %v893, %v913
        %v927 = vsel %vm232, %v898, %v910
        %v928 = vsel %vm233, %v894, %v914
        %v929 = vsel %vm232, %v899, %v911
        %v930 = vsel %vm233, %v895, %v915
        %v931 = vsel %vm232, %v900, %v912
        %v932 = vsel %vm233, %v896, %v916
        %v933 = vadd.f32 %v917, %v619
        %v934 = vadd.f32 %v918, %v620
        %v935 = vadd.f32 %v919, %v621
        %v936 = vadd.f32 %v920, %v622
        %v937 = vadd.f32 %v921, %v623
        %v938 = vadd.f32 %v922, %v624
        %v939 = vadd.f32 %v923, %v625
        %v940 = vadd.f32 %v924, %v626
        %v941 = vadd.f32 %v933, %v925
        %v942 = vadd.f32 %v934, %v926
        %v943 = vadd.f32 %v935, %v927
        %v944 = vadd.f32 %v936, %v928
        %v945 = vadd.f32 %v937, %v929
        %v946 = vadd.f32 %v938, %v930
        %v947 = vadd.f32 %v939, %v931
        %v948 = vadd.f32 %v940, %v932
        %v949 = vmul.f32 %v685, %v749
        %v950 = vmul.f32 %v686, %v750
        %v951 = vmul.f32 %v687, %v751
        %v952 = vmul.f32 %v688, %v752
        %v953 = vmul.f32 %v689, %v753
        %v954 = vmul.f32 %v690, %v754
        %v955 = vmul.f32 %v691, %v755
        %v956 = vmul.f32 %v692, %v756
        %v957 = vmul.f32 %v685, %v685
        %v958 = vmul.f32 %v686, %v686
        %v959 = vmul.f32 %v687, %v687
        %v960 = vmul.f32 %v688, %v688
        %v961 = vmul.f32 %v689, %v689
        %v962 = vmul.f32 %v690, %v690
        %v963 = vmul.f32 %v691, %v691
        %v964 = vmul.f32 %v692, %v692
        %v965 = vmul.f32 %v749, %v749
        %v966 = vmul.f32 %v750, %v750
        %v967 = vmul.f32 %v751, %v751
        %v968 = vmul.f32 %v752, %v752
        %v969 = vmul.f32 %v753, %v753
        %v970 = vmul.f32 %v754, %v754
        %v971 = vmul.f32 %v755, %v755
        %v972 = vmul.f32 %v756, %v756
        %v973 = vmul.f32 %v949, 2.0
        %v974 = vmul.f32 %v950, 2.0
        %v975 = vmul.f32 %v951, 2.0
        %v976 = vmul.f32 %v952, 2.0
        %v977 = vmul.f32 %v953, 2.0
        %v978 = vmul.f32 %v954, 2.0
        %v979 = vmul.f32 %v955, 2.0
        %v980 = vmul.f32 %v956, 2.0
        %v981 = vadd.f32 %v973, 0.0081
        %v982 = vadd.f32 %v974, 0.0081
        %v983 = vadd.f32 %v975, 0.0081
        %v984 = vadd.f32 %v976, 0.0081
        %v985 = vadd.f32 %v977, 0.0081
        %v986 = vadd.f32 %v978, 0.0081
        %v987 = vadd.f32 %v979, 0.0081
        %v988 = vadd.f32 %v980, 0.0081
        %v989 = vmul.f32 %v941, 18.0
        %v990 = vmul.f32 %v942, 18.0
        %v991 = vmul.f32 %v943, 18.0
        %v992 = vmul.f32 %v944, 18.0
        %v993 = vmul.f32 %v945, 18.0
        %v994 = vmul.f32 %v946, 18.0
        %v995 = vmul.f32 %v947, 18.0
        %v996 = vmul.f32 %v948, 18.0
        %v997 = vsub.f32 %v989, %v973
        %v998 = vsub.f32 %v990, %v974
        %v999 = vsub.f32 %v991, %v975
        %v1000 = vsub.f32 %v992, %v976
        %v1001 = vsub.f32 %v993, %v977
        %v1002 = vsub.f32 %v994, %v978
        %v1003 = vsub.f32 %v995, %v979
        %v1004 = vsub.f32 %v996, %v980
        %v1005 = vadd.f32 %v997, 0.0729
        %v1006 = vadd.f32 %v998, 0.0729
        %v1007 = vadd.f32 %v999, 0.0729
        %v1008 = vadd.f32 %v1000, 0.0729
        %v1009 = vadd.f32 %v1001, 0.0729
        %v1010 = vadd.f32 %v1002, 0.0729
        %v1011 = vadd.f32 %v1003, 0.0729
        %v1012 = vadd.f32 %v1004, 0.0729
        %v1013 = vmul.f32 %v981, %v1005
        %v1014 = vmul.f32 %v982, %v1006
        %v1015 = vmul.f32 %v983, %v1007
        %v1016 = vmul.f32 %v984, %v1008
        %v1017 = vmul.f32 %v985, %v1009
        %v1018 = vmul.f32 %v986, %v1010
        %v1019 = vmul.f32 %v987, %v1011
        %v1020 = vmul.f32 %v988, %v1012
        %v1021 = vadd.f32 %v957, %v965
        %v1022 = vadd.f32 %v958, %v966
        %v1023 = vadd.f32 %v959, %v967
        %v1024 = vadd.f32 %v960, %v968
        %v1025 = vadd.f32 %v961, %v969
        %v1026 = vadd.f32 %v962, %v970
        %v1027 = vadd.f32 %v963, %v971
        %v1028 = vadd.f32 %v964, %v972
        %v1029 = vadd.f32 %v1021, 0.0081
        %v1030 = vadd.f32 %v1022, 0.0081
        %v1031 = vadd.f32 %v1023, 0.0081
        %v1032 = vadd.f32 %v1024, 0.0081
        %v1033 = vadd.f32 %v1025, 0.0081
        %v1034 = vadd.f32 %v1026, 0.0081
        %v1035 = vadd.f32 %v1027, 0.0081
        %v1036 = vadd.f32 %v1028, 0.0081
        %v1037 = vadd.f32 %v813, %v877
        %v1038 = vadd.f32 %v814, %v878
        %v1039 = vadd.f32 %v815, %v879
        %v1040 = vadd.f32 %v816, %v880
        %v1041 = vadd.f32 %v817, %v881
        %v1042 = vadd.f32 %v818, %v882
        %v1043 = vadd.f32 %v819, %v883
        %v1044 = vadd.f32 %v820, %v884
        %v1045 = vmul.f32 %v1037, 9.0
        %v1046 = vmul.f32 %v1038, 9.0
        %v1047 = vmul.f32 %v1039, 9.0
        %v1048 = vmul.f32 %v1040, 9.0
        %v1049 = vmul.f32 %v1041, 9.0
        %v1050 = vmul.f32 %v1042, 9.0
        %v1051 = vmul.f32 %v1043, 9.0
        %v1052 = vmul.f32 %v1044, 9.0
        %v1053 = vsub.f32 %v1045, %v957
        %v1054 = vsub.f32 %v1046, %v958
        %v1055 = vsub.f32 %v1047, %v959
        %v1056 = vsub.f32 %v1048, %v960
        %v1057 = vsub.f32 %v1049, %v961
        %v1058 = vsub.f32 %v1050, %v962
        %v1059 = vsub.f32 %v1051, %v963
        %v1060 = vsub.f32 %v1052, %v964
        %v1061 = vsub.f32 %v1053, %v965
        %v1062 = vsub.f32 %v1054, %v966
        %v1063 = vsub.f32 %v1055, %v967
        %v1064 = vsub.f32 %v1056, %v968
        %v1065 = vsub.f32 %v1057, %v969
        %v1066 = vsub.f32 %v1058, %v970
        %v1067 = vsub.f32 %v1059, %v971
        %v1068 = vsub.f32 %v1060, %v972
        %v1069 = vadd.f32 %v1061, 0.0729
        %v1070 = vadd.f32 %v1062, 0.0729
        %v1071 = vadd.f32 %v1063, 0.0729
        %v1072 = vadd.f32 %v1064, 0.0729
        %v1073 = vadd.f32 %v1065, 0.0729
        %v1074 = vadd.f32 %v1066, 0.0729
        %v1075 = vadd.f32 %v1067, 0.0729
        %v1076 = vadd.f32 %v1068, 0.0729
        %v1077 = vmul.f32 %v1029, %v1069
        %v1078 = vmul.f32 %v1030, %v1070
        %v1079 = vmul.f32 %v1031, %v1071
        %v1080 = vmul.f32 %v1032, %v1072
        %v1081 = vmul.f32 %v1033, %v1073
        %v1082 = vmul.f32 %v1034, %v1074
        %v1083 = vmul.f32 %v1035, %v1075
        %v1084 = vmul.f32 %v1036, %v1076
        %v1085 = vrcp.pop %v1077
        %v1086 = vrcp.pop %v1078
        %v1087 = vrcp.pop %v1079
        %v1088 = vrcp.pop %v1080
        %v1089 = vrcp.pop %v1081
        %v1090 = vrcp.pop %v1082
        %v1091 = vrcp.pop %v1083
        %v1092 = vrcp.pop %v1084
        %v1093 = vmul.f32 %v1077, %v1085
        %v1094 = vmul.f32 %v1078, %v1086
        %v1095 = vmul.f32 %v1079, %v1087
        %v1096 = vmul.f32 %v1080, %v1088
        %v1097 = vmul.f32 %v1081, %v1089
        %v1098 = vmul.f32 %v1082, %v1090
        %v1099 = vmul.f32 %v1083, %v1091
        %v1100 = vmul.f32 %v1084, %v1092
        %v1101 = vsub.f32 2.0, %v1093
        %v1102 = vsub.f32 2.0, %v1094
        %v1103 = vsub.f32 2.0, %v1095
        %v1104 = vsub.f32 2.0, %v1096
        %v1105 = vsub.f32 2.0, %v1097
        %v1106 = vsub.f32 2.0, %v1098
        %v1107 = vsub.f32 2.0, %v1099
        %v1108 = vsub.f32 2.0, %v1100
        %v1109 = vmul.f32 %v1085, %v1101
        %v1110 = vmul.f32 %v1086, %v1102
        %v1111 = vmul.f32 %v1087, %v1103
        %v1112 = vmul.f32 %v1088, %v1104
        %v1113 = vmul.f32 %v1089, %v1105
        %v1114 = vmul.f32 %v1090, %v1106
        %v1115 = vmul.f32 %v1091, %v1107
        %v1116 = vmul.f32 %v1092, %v1108
        %v1117 = vmul.f32 %v1013, %v1109
        %v1118 = vmul.f32 %v1014, %v1110
        %v1119 = vmul.f32 %v1015, %v1111
        %v1120 = vmul.f32 %v1016, %v1112
        %v1121 = vmul.f32 %v1017, %v1113
        %v1122 = vmul.f32 %v1018, %v1114
        %v1123 = vmul.f32 %v1019, %v1115
        %v1124 = vmul.f32 %v1020, %v1116
        %v1125 = vsub.f32 1.0, %v1117
        %v1126 = vsub.f32 1.0, %v1118
        %v1127 = vsub.f32 1.0, %v1119
        %v1128 = vsub.f32 1.0, %v1120
        %v1129 = vsub.f32 1.0, %v1121
        %v1130 = vsub.f32 1.0, %v1122
        %v1131 = vsub.f32 1.0, %v1123
        %v1132 = vsub.f32 1.0, %v1124
        %v1133 = vmul.f32 %v1125, 0.5
        %v1134 = vmul.f32 %v1126, 0.5
        %v1135 = vmul.f32 %v1127, 0.5
        %v1136 = vmul.f32 %v1128, 0.5
        %v1137 = vmul.f32 %v1129, 0.5
        %v1138 = vmul.f32 %v1130, 0.5
        %v1139 = vmul.f32 %v1131, 0.5
        %v1140 = vmul.f32 %v1132, 0.5
        %v1141 = vmax.f32 %v1133, 0.0
        %v1142 = vmax.f32 %v1134, 0.0
        %v1143 = vmax.f32 %v1135, 0.0
        %v1144 = vmax.f32 %v1136, 0.0
        %v1145 = vmax.f32 %v1137, 0.0
        %v1146 = vmax.f32 %v1138, 0.0
        %v1147 = vmax.f32 %v1139, 0.0
        %v1148 = vmax.f32 %v1140, 0.0
        %v1149 = vmin.f32 %v1141, 1.0
        %v1150 = vmin.f32 %v1142, 1.0
        %v1151 = vmin.f32 %v1143, 1.0
        %v1152 = vmin.f32 %v1144, 1.0
        %v1153 = vmin.f32 %v1145, 1.0
        %v1154 = vmin.f32 %v1146, 1.0
        %v1155 = vmin.f32 %v1147, 1.0
        %v1156 = vmin.f32 %v1148, 1.0
        %vm1157 = vcmask 130048
        %1158 = vst.msk [vmem:[%s203] sm:$0xff] %vm1157, %v1149
        %1159 = vst.msk [vmem:[%s203 + $0x8] sm:$0xff] %vm1157, %v1150
        %1160 = vst.msk [vmem:[%s203 + $0x10] sm:$0xff] %vm1157, %v1151
        %1161 = vst.msk [vmem:[%s203 + $0x18] sm:$0xff] %vm1157, %v1152
        %1162 = vst.msk [vmem:[%s203 + $0x20] sm:$0xff] %vm1157, %v1153
        %1163 = vst.msk [vmem:[%s203 + $0x28] sm:$0xff] %vm1157, %v1154
        %1164 = vst.msk [vmem:[%s203 + $0x30] sm:$0xff] %vm1157, %v1155
        %1165 = vst.msk [vmem:[%s203 + $0x38] sm:$0xff] %vm1157, %v1156
        %s1166 = sand.u32 %s82, 1
        %s1167 = scalar_lea.sflag [#allocation4], %s1166
        %s1168 = sand.u32 %s82, 1
        %s1169 = smul.addr %s1168, 64
        %s1170 = scalar_lea.vmem [#allocation7], %s1169
        // Predicated region
        $region37: #{tpu_custom_call.1} parent=27 // pred_check
          %p1171 = pneg %p92
        $region38: #{tpu_custom_call.1} parent=27 // pred_check_branch
          %1173 = sbr.rel (%p1171) target = $region40
        $region39: #{tpu_custom_call.1} parent=27 // pred_region
          %s1174 = smul.u32 4, %s22
          %s1176 = ssub.s32 1024, 1024
          %1177 = vsyncadd %s1167, %s1176
          %s1178 = smul.addr %s1174, 2
          %s1179 = smul.addr %s1178, 128
          %s1180 = scalar_lea.hbm %s2, %s1179
          %s1181 = sshll.u32 %s1170, 4
          %s1182 = int_to_ptr.vmem [resolvable:$true] %s1181
          %1187 = dma.vmem_to_hbm [thread:$0]  %s1182, 1024, %s1180, %s1167, 128, 128, 8
        $region40: #{tpu_custom_call.1} parent=27 // pred_fallthru
          _
      $region28: #{tpu_custom_call.1} parent=5 // pred_fallthru
        _
      %p1188 = scmp.le.s32.totalorder 2, %s17
      // Predicated region
      $region41: #{tpu_custom_call.1} parent=5 // pred_check
        %p1189 = pneg %p1188
      $region42: #{tpu_custom_call.1} parent=5 // pred_check_branch
        %1191 = sbr.rel (%p1189) target = $region44
      $region43: #{tpu_custom_call.1} parent=5 // pred_region
        %s1192 = ssub.s32 %s17, 2
        // Predicated region
        $region45: #{tpu_custom_call.1} parent=43 // pred_check
          %p1193 = pneg %p98
        $region46: #{tpu_custom_call.1} parent=43 // pred_check_branch
          %1195 = sbr.rel (%p1193) target = $region48
        $region47: #{tpu_custom_call.1} parent=43 // pred_region
          %s1196 = sand.u32 %s83, 1
          %s1197 = scalar_lea.sflag [#allocation4], %s1196
          %s1198 = sand.u32 %s83, 1
          %s1199 = smul.addr %s1198, 64
          %s1200 = scalar_lea.vmem [#allocation7], %s1199
          %1201 = dma.done %s1197, 1024
        $region48: #{tpu_custom_call.1} parent=43 // pred_fallthru
          _
      $region44: #{tpu_custom_call.1} parent=5 // pred_fallthru
        _
    $region6: #{tpu_custom_call.1} parent=1 // loop_footer
      %s21 = sadd.s32 1, %s17
    $region7: #{tpu_custom_call.1} parent=1 // loop_footer_branch
      %16 = sbr.rel target = $region3
    $region8: #{tpu_custom_call.1} parent=1 // loop_exit
      _
    %1202 = vsyncpa [#allocation3], 1
    %s1203 = scalar_lea.sflag [#allocation3], 1
    %1204 = vsyncpa %s1203, 1
    %1205 = vsyncpa [#allocation6], 1
    %s1206 = scalar_lea.sflag [#allocation6], 1
    %1207 = vsyncpa %s1206, 1
    %1208 = vsyncpa [#allocation4], 1
    %s1209 = scalar_lea.sflag [#allocation4], 1
    %1210 = vsyncpa %s1209, 1

</llo_original>
